<compile_context>
chip_gen: v5e
topology: v5e:2x2
jax: 0.10.0
libtpu: 0.0.40
codegen_flags: <defaults>
</compile_context>

<pallas_src>
import functools

import jax
import jax.numpy as jnp
import numpy as np
from jax.experimental import pallas as pl
from jax.experimental.pallas import tpu as pltpu


# ------------------------------- small helpers ------------------------------

def _round_up(x, m):
    return (x + m - 1) // m * m


_VMEM_LIMIT_CACHE = []


def _vmem_limit_bytes():
    """Per-generation VMEM budget: ~3/4 of physical, capped at 96 MiB.

    v7x (64 MiB / TensorCore) -> 48 MiB; v5e/v6e (128 MiB) -> 96 MiB.
    Falls back to a conservative 48 MiB if the query is unavailable.
    """
    if not _VMEM_LIMIT_CACHE:
        try:
            cap = pltpu.get_tpu_info().vmem_capacity_bytes
            _VMEM_LIMIT_CACHE.append(int(min(cap * 3 // 4, 96 * 1024 * 1024)))
        except Exception:
            _VMEM_LIMIT_CACHE.append(48 * 1024 * 1024)
    return _VMEM_LIMIT_CACHE[0]


def _pick_tm(M, target=256):
    """Largest M-tile (multiple of 16 for bf16 sublane packing) dividing M.

    Prefers >=2 row blocks so the 'parallel' grid axis feeds both v7x
    TensorCores.  Returns (tile_m, padded_M); padding only triggers when M has
    no suitable divisor (never for the shapes used here).
    """
    cands = sorted({c for c in (target, 512, 256, 128, 64, 32, 16) if c <= M},
                   reverse=True)
    for c in cands:
        if M % c == 0 and M // c >= 2:
            return c, M
    for c in cands:
        if M % c == 0:
            return c, M
    tm = min(target, _round_up(M, 16))
    return tm, _round_up(M, tm)


# ----------------------------- Pallas kernels -------------------------------

def _mm_bn_act_kernel(a_ref, w_ref, s_ref, b_ref, o_ref, *, relu):
    """o = [relu]((A @ W) * scale + bias); full-K, full-N, M-only grid."""
    y = jnp.dot(a_ref[...], w_ref[...], preferred_element_type=jnp.float32)
    y = y * s_ref[...] + b_ref[...]
    if relu:
        y = jnp.maximum(y, 0.0)
    o_ref[...] = y.astype(o_ref.dtype)


def _conv3_identity_kernel(a_ref, w_ref, s_ref, b_ref, r_ref, o_ref):
    """o = relu((A @ W3) * s3 + b3 + residual)."""
    y = jnp.dot(a_ref[...], w_ref[...], preferred_element_type=jnp.float32)
    y = y * s_ref[...] + b_ref[...] + r_ref[...].astype(jnp.float32)
    o_ref[...] = jnp.maximum(y, 0.0).astype(o_ref.dtype)


def _conv3_proj_kernel(a_ref, w_ref, s_ref, b_ref,
                       x_ref, wp_ref, sp_ref, bp_ref, o_ref):
    """o = relu((A @ W3)*s3 + b3 + (Xs @ Wp)*sp + bp); projection fused."""
    y = jnp.dot(a_ref[...], w_ref[...], preferred_element_type=jnp.float32)
    y = y * s_ref[...] + b_ref[...]
    p = jnp.dot(x_ref[...], wp_ref[...], preferred_element_type=jnp.float32)
    p = p * sp_ref[...] + bp_ref[...]
    o_ref[...] = jnp.maximum(y + p, 0.0).astype(o_ref.dtype)


def _conv3x3_kernel(x_ref, w_ref, s_ref, b_ref, o_ref,
                    *, Ho, Wo, Wq, stride, taps):
    """3x3 conv + BN + ReLU for one image, no HBM im2col.

    x_ref: (1, Hp*Wq, stride*C1) zero-padded, column-phase-packed NHWC image.
    w_ref: (len(taps), stride*C1, C2) phase-expanded weights.
    Each tap reads a contiguous Wo-row window of the packed image and feeds
    one accumulating matmul; output rows are Python-unrolled (feature maps
    here are small).
    """
    scale = s_ref[...]
    bias = b_ref[...]
    C2 = o_ref.shape[-1]
    for i in range(Ho):
        acc = jnp.zeros((Wo, C2), jnp.float32)
        for t, (dy, qoff) in enumerate(taps):
            start = (stride * i + dy) * Wq + qoff      # static python int
            win = x_ref[0, pl.ds(start, Wo), :]
            acc = acc + jnp.dot(win, w_ref[t],
                                preferred_element_type=jnp.float32)
        y = jnp.maximum(acc * scale + bias, 0.0)
        o_ref[0, pl.ds(i * Wo, Wo), :] = y.astype(o_ref.dtype)


# --------------------------- pallas_call wrappers ----------------------------

def _matmul_bn_act(a_bf16, w_bf16, scale, bias, *, relu, out_dtype):
    """(A @ W) * scale + bias [+ relu], A streamed once over an M-only grid."""
    M, K = a_bf16.shape
    N = w_bf16.shape[1]
    tm, Mp = _pick_tm(M)
    if Mp != M:
        a_bf16 = jnp.pad(a_bf16, ((0, Mp - M), (0, 0)))
    s2d = scale.astype(jnp.float32).reshape(1, N)
    b2d = bias.astype(jnp.float32).reshape(1, N)

    out = pl.pallas_call(
        functools.partial(_mm_bn_act_kernel, relu=relu),
        out_shape=jax.ShapeDtypeStruct((Mp, N), out_dtype),
        grid=(Mp // tm,),
        in_specs=[
            pl.BlockSpec((tm, K), lambda i: (i, 0)),     # A: streamed once
            pl.BlockSpec((K, N), lambda i: (0, 0)),      # W: VMEM-resident
            pl.BlockSpec((1, N), lambda i: (0, 0)),      # scale
            pl.BlockSpec((1, N), lambda i: (0, 0)),      # bias
        ],
        out_specs=pl.BlockSpec((tm, N), lambda i: (i, 0)),
        compiler_params=pltpu.CompilerParams(
            dimension_semantics=("parallel",),
            vmem_limit_bytes=_vmem_limit_bytes()),
        cost_estimate=pl.CostEstimate(
            flops=int(2 * Mp * N * K),
            transcendentals=0,
            bytes_accessed=int(2 * Mp * K + 2 * K * N + 8 * N
                               + Mp * N * jnp.dtype(out_dtype).itemsize)),
    )(a_bf16, w_bf16, s2d, b2d)
    return out[:M] if Mp != M else out


def _conv3_fused(y2, w3, s3, b3, resid_or_x, wp=None, sp=None, bp=None,
                 *, out_dtype=jnp.float32):
    """conv3 (1x1) + BN with the residual add + ReLU fused; optionally also
    the projection 1x1 conv + BN fused as a second matmul (no HBM round-trip
    for the residual)."""
    M, K3 = y2.shape
    N = w3.shape[1]
    tm, Mp = _pick_tm(M)
    if Mp != M:
        y2 = jnp.pad(y2, ((0, Mp - M), (0, 0)))
        resid_or_x = jnp.pad(resid_or_x, ((0, Mp - M), (0, 0)))
    Kr = resid_or_x.shape[1]
    s3d = s3.astype(jnp.float32).reshape(1, N)
    b3d = b3.astype(jnp.float32).reshape(1, N)

    if wp is None:
        kernel = _conv3_identity_kernel
        extra_args = (resid_or_x,)
        extra_specs = [pl.BlockSpec((tm, Kr), lambda i: (i, 0))]
        flops = 2 * Mp * N * K3
    else:
        kernel = _conv3_proj_kernel
        spd = sp.astype(jnp.float32).reshape(1, N)
        bpd = bp.astype(jnp.float32).reshape(1, N)
        extra_args = (resid_or_x, wp, spd, bpd)
        extra_specs = [
            pl.BlockSpec((tm, Kr), lambda i: (i, 0)),
            pl.BlockSpec((Kr, N), lambda i: (0, 0)),
            pl.BlockSpec((1, N), lambda i: (0, 0)),
            pl.BlockSpec((1, N), lambda i: (0, 0)),
        ]
        flops = 2 * Mp * N * (K3 + Kr)

    out = pl.pallas_call(
        kernel,
        out_shape=jax.ShapeDtypeStruct((Mp, N), out_dtype),
        grid=(Mp // tm,),
        in_specs=[
            pl.BlockSpec((tm, K3), lambda i: (i, 0)),
            pl.BlockSpec((K3, N), lambda i: (0, 0)),
            pl.BlockSpec((1, N), lambda i: (0, 0)),
            pl.BlockSpec((1, N), lambda i: (0, 0)),
        ] + extra_specs,
        out_specs=pl.BlockSpec((tm, N), lambda i: (i, 0)),
        compiler_params=pltpu.CompilerParams(
            dimension_semantics=("parallel",),
            vmem_limit_bytes=_vmem_limit_bytes()),
        cost_estimate=pl.CostEstimate(
            flops=int(flops),
            transcendentals=0,
            bytes_accessed=int(2 * Mp * (K3 + Kr) + 2 * N * (K3 + Kr)
                               + Mp * N * jnp.dtype(out_dtype).itemsize)),
    )(y2, w3, s3d, b3d, *extra_args)
    return out[:M] if Mp != M else out


def _conv2_weights(w_oihw, stride):
    """(C2, C1, 3, 3) -> (n_taps, stride*C1, C2) phase-expanded tap weights.

    Taps that read the same packed window (same dy and same column-pair
    offset) are merged by summing their phase-disjoint expanded weights, so a
    stride-2 conv needs only 6 matmuls per output row instead of 9.
    """
    C2, C1, kh, kw = w_oihw.shape
    groups = {}
    for dy in range(kh):
        for dx in range(kw):
            key = (dy, dx // stride)
            phi = dx % stride
            tap = jnp.zeros((stride * C1, C2), jnp.float32)
            tap = tap.at[phi * C1:(phi + 1) * C1, :].set(w_oihw[:, :, dy, dx].T)
            groups[key] = groups.get(key, 0.0) + tap
    taps = tuple(sorted(groups))
    w2 = jnp.stack([groups[k] for k in taps], axis=0).astype(jnp.bfloat16)
    return w2, taps


def _conv3x3_bn_relu(xq, w2, scale, bias, *, taps, Hp, Wq, stride, Ho, Wo):
    n_img, _, pc1 = xq.shape
    C2 = w2.shape[-1]
    s2d = scale.astype(jnp.float32).reshape(1, C2)
    b2d = bias.astype(jnp.float32).reshape(1, C2)
    kernel = functools.partial(_conv3x3_kernel, Ho=Ho, Wo=Wo, Wq=Wq,
                               stride=stride, taps=taps)
    return pl.pallas_call(
        kernel,
        out_shape=jax.ShapeDtypeStruct((n_img, Ho * Wo, C2), jnp.bfloat16),
        grid=(n_img,),
        in_specs=[
            pl.BlockSpec((1, Hp * Wq, pc1), lambda n: (n, 0, 0)),  # image
            pl.BlockSpec(tuple(w2.shape), lambda n: (0, 0, 0)),    # taps
            pl.BlockSpec((1, C2), lambda n: (0, 0)),               # scale
            pl.BlockSpec((1, C2), lambda n: (0, 0)),               # bias
        ],
        out_specs=pl.BlockSpec((1, Ho * Wo, C2), lambda n: (n, 0, 0)),
        compiler_params=pltpu.CompilerParams(
            dimension_semantics=("parallel",),
            vmem_limit_bytes=_vmem_limit_bytes()),
        cost_estimate=pl.CostEstimate(
            flops=int(2 * n_img * Ho * Wo * len(taps) * pc1 * C2),
            transcendentals=0,
            bytes_accessed=int(2 * xq.size + 2 * w2.size + 8 * C2
                               + 2 * n_img * Ho * Wo * C2)),
    )(xq, w2, s2d, b2d)


# ------------------------------- glue (JAX) ---------------------------------

def _to_mm_weight(w_oihw):
    """PyTorch (Cout, Cin, 1, 1) -> (Cin, Cout) matmul weight."""
    Cout, Cin, kh, kw = w_oihw.shape
    return jnp.transpose(w_oihw, (2, 3, 1, 0)).reshape(kh * kw * Cin, Cout)


def _fuse_bn(gamma, beta, mean, var, eps=1e-5):
    scale = gamma / jnp.sqrt(var + eps)
    bias = beta - mean * scale
    return scale, bias


def init_bottleneck_params(key, in_plane, out_plane, stride):
    expansion = 4
    has_proj = (in_plane != out_plane * expansion) or (stride != 1)

    def conv_bn(key, cin, cout, kh, kw):
        ks = jax.random.split(key, 5)
        w = 0.1 * jax.random.normal(ks[0], (cout, cin, kh, kw), jnp.float32)
        gamma = 1.0 + 0.1 * jax.random.normal(ks[1], (cout,), jnp.float32)
        beta = 0.1 * jax.random.normal(ks[2], (cout,), jnp.float32)
        mean = 0.1 * jax.random.normal(ks[3], (cout,), jnp.float32)
        var = jax.random.uniform(ks[4], (cout,), jnp.float32, 0.5, 1.5)
        return w, (gamma, beta, mean, var)

    k1, k2, k3, k4 = jax.random.split(key, 4)
    p = {}
    p['conv1_w'], p['bn1'] = conv_bn(k1, in_plane, out_plane, 1, 1)
    p['conv2_w'], p['bn2'] = conv_bn(k2, out_plane, out_plane, 3, 3)
    p['conv3_w'], p['bn3'] = conv_bn(k3, out_plane, out_plane * expansion, 1, 1)
    if has_proj:
        p['proj_w'], p['proj_bn'] = conv_bn(k4, in_plane, out_plane * expansion, 1, 1)
    return p, has_proj


def bottle_neck_forward(x_nchw, params, stride, has_proj):
    """Pallas implementation of bottle_neck.forward (eval-mode BN)."""
    N, Cin, H, W = x_nchw.shape

    # NCHW f32 -> NHWC bf16 in a single fused pass (transpose + cast).
    x_bf = jnp.transpose(x_nchw, (0, 2, 3, 1)).astype(jnp.bfloat16)

    # conv1: 1x1, stride 1 -> BN -> ReLU (bf16 intermediate).
    s1, b1 = _fuse_bn(*params['bn1'])
    w1 = _to_mm_weight(params['conv1_w']).astype(jnp.bfloat16)
    C1 = w1.shape[1]
    y1 = _matmul_bn_act(x_bf.reshape(N * H * W, Cin), w1, s1, b1,
                        relu=True, out_dtype=jnp.bfloat16)

    # conv2: 3x3, stride s, pad 1 -> BN -> ReLU.  No HBM im2col: the kernel
    # reads the zero-padded, column-phase-packed NHWC image once per step.
    P = stride
    Ho = (H + 2 - 3) // stride + 1
    Wo = (W + 2 - 3) // stride + 1
    Hp = H + 2
    Wpad = _round_up(W + 2, P)
    Wq = Wpad // P
    y1p = jnp.pad(y1.reshape(N, H, W, C1),
                  ((0, 0), (1, 1), (1, Wpad - W - 1), (0, 0)))
    xq = y1p.reshape(N, Hp * Wq, P * C1)          # free (contiguous) reshape
    s2, b2 = _fuse_bn(*params['bn2'])
    w2, taps = _conv2_weights(params['conv2_w'], P)
    y2 = _conv3x3_bn_relu(xq, w2, s2, b2, taps=taps, Hp=Hp, Wq=Wq,
                          stride=P, Ho=Ho, Wo=Wo)
    M3 = N * Ho * Wo
    y2 = y2.reshape(M3, -1)

    # conv3: 1x1 -> BN, with residual / projection fused into the epilogue.
    s3, b3 = _fuse_bn(*params['bn3'])
    w3 = _to_mm_weight(params['conv3_w']).astype(jnp.bfloat16)
    if has_proj:
        sp, bp = _fuse_bn(*params['proj_bn'])
        wp = _to_mm_weight(params['proj_w']).astype(jnp.bfloat16)
        xs = x_bf[:, ::stride, ::stride, :].reshape(M3, Cin)
        out = _conv3_fused(y2, w3, s3, b3, xs, wp, sp, bp,
                           out_dtype=jnp.float32)
    else:
        resid = x_bf.reshape(M3, Cin)             # Cin == 4*out_plane here
        out = _conv3_fused(y2, w3, s3, b3, resid, out_dtype=jnp.float32)

    out = out.reshape(N, Ho, Wo, -1)
    return jnp.transpose(out, (0, 3, 1, 2))       # back to NCHW


# ----------------------------- pure-JAX reference ----------------------------

def _ref_bottleneck(x, params, stride, has_proj):
    def conv_bn(x, w, bn, st, pad):
        y = jax.lax.conv_general_dilated(
            x, w, (st, st), [(pad[0], pad[0]), (pad[1], pad[1])],
            dimension_numbers=('NCHW', 'OIHW', 'NCHW'))
        s, b = _fuse_bn(*bn)
        return y * s[None, :, None, None] + b[None, :, None, None]

    r = jax.nn.relu(conv_bn(x, params['conv1_w'], params['bn1'], 1, (0, 0)))
    r = jax.nn.relu(conv_bn(r, params['conv2_w'], params['bn2'], stride, (1, 1)))
    r = conv_bn(r, params['conv3_w'], params['bn3'], 1, (0, 0))
    p = conv_bn(x, params['proj_w'], params['proj_bn'], stride, (0, 0)) if has_proj else x
    return jax.nn.relu(r + p)


# ---------------------------------- main -------------------------------------

if __name__ == "__main__":
    key = jax.random.PRNGKey(0)

    # bf16 operands with f32 accumulation -> loosened tolerance vs f32 reference.
    RTOL = ATOL = 3e-2

    # Case 1: projection path (stride=2, in_plane != out_plane*4).
    kx1, kp1, kx2, kp2 = jax.random.split(key, 4)
    in_plane, out_plane, stride = 8, 4, 2
    x1 = jax.random.normal(kx1, (2, in_plane, 16, 16), jnp.float32)
    params1, has_proj1 = init_bottleneck_params(kp1, in_plane, out_plane, stride)
    out1 = bottle_neck_forward(x1, params1, stride, has_proj1)
    jax.block_until_ready(out1)
    ref1 = _ref_bottleneck(x1, params1, stride, has_proj1)
    np.testing.assert_allclose(np.asarray(out1), np.asarray(ref1), rtol=RTOL, atol=ATOL)

    # Case 2: identity residual path (stride=1, in_plane == out_plane*4).
    in_plane, out_plane, stride = 16, 4, 1
    x2 = jax.random.normal(kx2, (2, in_plane, 16, 16), jnp.float32)
    params2, has_proj2 = init_bottleneck_params(kp2, in_plane, out_plane, stride)
    out2 = bottle_neck_forward(x2, params2, stride, has_proj2)
    jax.block_until_ready(out2)
    ref2 = _ref_bottleneck(x2, params2, stride, has_proj2)
    np.testing.assert_allclose(np.asarray(out2), np.asarray(ref2), rtol=RTOL, atol=ATOL)

    print("KERNEL_OK")
</pallas_src>

<mosaic_0001>
module attributes {stable_mosaic.version = 11 : i64} {
  func.func @_mm_bn_act_kernel(%arg0: i32, %arg1: memref<256x8xbf16, #tpu.memory_space<vmem>>, %arg2: memref<8x4xbf16, #tpu.memory_space<vmem>>, %arg3: memref<1x4xf32, #tpu.memory_space<vmem>>, %arg4: memref<1x4xf32, #tpu.memory_space<vmem>>, %arg5: memref<256x4xbf16, #tpu.memory_space<vmem>>) attributes {dimension_semantics = [#tpu.dimension_semantics<parallel>], iteration_bounds = array<i64: 2>, scalar_prefetch = 0 : i64, scratch_operands = 0 : i64, tpu.core_type = #tpu.core_type<tc>, window_params = [{transform_indices = @transform_0, window_bounds = array<i64: 256, 8>}, {pipeline_mode = #tpu.pipeline_mode<synchronous>, transform_indices = @transform_1, window_bounds = array<i64: 8, 4>}, {pipeline_mode = #tpu.pipeline_mode<synchronous>, transform_indices = @transform_2, window_bounds = array<i64: 1, 4>}, {pipeline_mode = #tpu.pipeline_mode<synchronous>, transform_indices = @transform_3, window_bounds = array<i64: 1, 4>}, {transform_indices = @transform_4, window_bounds = array<i64: 256, 4>}]} {
    %c0 = arith.constant 0 : index
    %c0_0 = arith.constant 0 : index
    %0 = vector.load %arg1[%c0, %c0_0] : memref<256x8xbf16, #tpu.memory_space<vmem>>, vector<256x8xbf16>
    %c0_1 = arith.constant 0 : index
    %c0_2 = arith.constant 0 : index
    %1 = vector.load %arg2[%c0_1, %c0_2] : memref<8x4xbf16, #tpu.memory_space<vmem>>, vector<8x4xbf16>
    %cst = arith.constant dense<0.000000e+00> : vector<256x4xf32>
    %2 = tpu.matmul %0, %1, %cst {dimension_numbers = #tpu.dot_dimension_numbers<[1], [0], [0], [1], [0, 0, 1, 1], [], []>} : vector<256x8xbf16>, vector<8x4xbf16>, vector<256x4xf32> -> vector<256x4xf32>
    %c0_3 = arith.constant 0 : index
    %c0_4 = arith.constant 0 : index
    %3 = vector.load %arg3[%c0_3, %c0_4] : memref<1x4xf32, #tpu.memory_space<vmem>>, vector<1x4xf32>
    %4 = vector.broadcast %3 : vector<1x4xf32> to vector<256x4xf32>
    %5 = arith.mulf %2, %4 : vector<256x4xf32>
    %c0_5 = arith.constant 0 : index
    %c0_6 = arith.constant 0 : index
    %6 = vector.load %arg4[%c0_5, %c0_6] : memref<1x4xf32, #tpu.memory_space<vmem>>, vector<1x4xf32>
    %7 = vector.broadcast %6 : vector<1x4xf32> to vector<256x4xf32>
    %8 = arith.addf %5, %7 : vector<256x4xf32>
    %cst_7 = arith.constant 0.000000e+00 : f32
    %9 = vector.broadcast %cst_7 : f32 to vector<256x4xf32>
    %10 = arith.maximumf %8, %9 : vector<256x4xf32>
    %11 = arith.truncf %10 : vector<256x4xf32> to vector<256x4xbf16>
    %c0_8 = arith.constant 0 : index
    %c0_9 = arith.constant 0 : index
    %12 = vector.load %arg5[%c0_8, %c0_9] : memref<256x4xbf16, #tpu.memory_space<vmem>>, vector<256x4xbf16>
    tpu.vector_store %arg5[%c0_8, %c0_9], %11 {strides = array<i32>} : memref<256x4xbf16, #tpu.memory_space<vmem>>, vector<256x4xbf16>,
    return
  }
  func.func @transform_0(%arg0: i32) -> (i32, i32) {
    %c0_i32 = arith.constant 0 : i32
    %c0_i32_0 = arith.constant 0 : i32
    return %arg0, %c0_i32 : i32, i32
  }
  func.func @transform_1(%arg0: i32) -> (i32, i32) {
    %c0_i32 = arith.constant 0 : i32
    %c0_i32_0 = arith.constant 0 : i32
    %c0_i32_1 = arith.constant 0 : i32
    return %c0_i32, %c0_i32_0 : i32, i32
  }
  func.func @transform_2(%arg0: i32) -> (i32, i32) {
    %c0_i32 = arith.constant 0 : i32
    %c0_i32_0 = arith.constant 0 : i32
    %c0_i32_1 = arith.constant 0 : i32
    return %c0_i32, %c0_i32_0 : i32, i32
  }
  func.func @transform_3(%arg0: i32) -> (i32, i32) {
    %c0_i32 = arith.constant 0 : i32
    %c0_i32_0 = arith.constant 0 : i32
    %c0_i32_1 = arith.constant 0 : i32
    return %c0_i32, %c0_i32_0 : i32, i32
  }
  func.func @transform_4(%arg0: i32) -> (i32, i32) {
    %c0_i32 = arith.constant 0 : i32
    %c0_i32_0 = arith.constant 0 : i32
    return %arg0, %c0_i32 : i32, i32
  }
}

</mosaic_0001>

<llo_original>
// kernel: tpu_custom_call.1
$region0: #{tpu_custom_call.1}
  #allocation0 [shape = 'u32[]', space=smem, size = 0x4, offset = 0x4, fixed_abs, tag = 'smem constant byte address 0x4 - core index']
  #allocation1 [shape = 'u32[72,128]{1,0:T(1,128)}', space=vmem, size = 0x9000, scoped, tag = 'internal scratch']
  %s0 = inlined_call_operand.vmem [shape: bf16[512,8], index: 0, kind: input, shape index: {}]
  %s1 = inlined_call_operand.vmem [shape: bf16[8,4], index: 1, kind: input, shape index: {}]
  %s2 = inlined_call_operand.vmem [shape: f32[1,4], index: 2, kind: input, shape index: {}]
  %s3 = inlined_call_operand.vmem [shape: f32[1,4], index: 3, kind: input, shape index: {}]
  %s4 = inlined_call_operand.vmem [shape: bf16[512,4], index: 4, kind: output, shape index: {}]
  %s5 = sld [smem:[#allocation0]]
  $region49: #{tpu_custom_call.1} parent=0
    _
  %s7 = ssub.s32 1, %s5
  %s8 = scalar_select 0, %s7, %s5
  loop: start=0, step=1, limit=4
  $region2: #{tpu_custom_call.1} parent=0 // loop_pre_header
    _
  $region3: #{tpu_custom_call.1} parent=0 // loop_header
    %s10 = sphi 0, %s14
    %p11 = scmp.ge.s32.totalorder %s10, 4
    %s20 = sphi 0, %s22
    %s23 = sphi 0, %s20
    %s24 = sphi 0, %s23
    %s40 = sphi 0, %s24
    %s44 = sphi 0, %s44
    %s46 = sphi 0, %s44
    %s47 = sphi 0, %s46
    %s61 = sphi 0, %s47
    %s65 = sphi 0, %s65
    %s67 = sphi 0, %s65
    %s68 = sphi 0, %s67
    %s82 = sphi 0, %s68
    %s86 = sphi 0, %s86
    %s88 = sphi 0, %s86
    %s89 = sphi 0, %s88
    %s103 = sphi 0, %s89
    %s109 = sphi 0, %s111
    %s112 = sphi 0, %s109
    %s113 = sphi 0, %s112
    %s129 = sphi 0, %s113
  $region4: #{tpu_custom_call.1} parent=0 // loop_header_branch
    %13 = sbr.rel (%p11) target = $region8
  $region5: #{tpu_custom_call.1} parent=0 // loop_body
    %s15 = ssub.s32 %s10, 1
    %s16 = ssub.s32 %s10, 2
    %s17 = sadd.s32 %s10, 1
    %s18 = ssub.s32 %s10, %s17
    %p19 = scmp.eq.s32.totalorder %s18, 0
    %s21 = sadd.s32 %s20, 1
    %s22 = scalar_select %p19, %s20, %s21
    %p25 = pneg %p19
    %p26 = scmp.eq.s32.totalorder %s10, 1
    %p27 = por %p25, %p26
    %p28 = scmp.ne.s32.totalorder %s20, %s23
    %p29 = scmp.eq.s32.totalorder %s10, 0
    %p30 = por %p28, %p29
    %p31 = scmp.ne.s32.totalorder %s20, %s23
    %p32 = scmp.eq.s32.totalorder %s15, 1
    %p33 = por %p31, %p32
    %p34 = scmp.ne.s32.totalorder %s23, %s24
    %p35 = scmp.eq.s32.totalorder %s15, 0
    %p36 = por %p34, %p35
    %p37 = scmp.ne.s32.totalorder %s23, %s24
    %p38 = scmp.eq.s32.totalorder %s16, 1
    %p39 = por %p37, %p38
    %p41 = scmp.ne.s32.totalorder %s24, %s40
    %p42 = scmp.eq.s32.totalorder %s16, 0
    %p43 = por %p41, %p42
    %s45 = sadd.s32 %s44, 1
    %p48 = scmp.eq.s32.totalorder %s10, 1
    %p49 = scmp.ne.s32.totalorder %s44, %s46
    %p50 = scmp.eq.s32.totalorder %s10, 0
    %p51 = por %p49, %p50
    %p52 = scmp.ne.s32.totalorder %s44, %s46
    %p53 = scmp.eq.s32.totalorder %s15, 1
    %p54 = por %p52, %p53
    %p55 = scmp.ne.s32.totalorder %s46, %s47
    %p56 = scmp.eq.s32.totalorder %s15, 0
    %p57 = por %p55, %p56
    %p58 = scmp.ne.s32.totalorder %s46, %s47
    %p59 = scmp.eq.s32.totalorder %s16, 1
    %p60 = por %p58, %p59
    %p62 = scmp.ne.s32.totalorder %s47, %s61
    %p63 = scmp.eq.s32.totalorder %s16, 0
    %p64 = por %p62, %p63
    %s66 = sadd.s32 %s65, 1
    %p69 = scmp.eq.s32.totalorder %s10, 1
    %p70 = scmp.ne.s32.totalorder %s65, %s67
    %p71 = scmp.eq.s32.totalorder %s10, 0
    %p72 = por %p70, %p71
    %p73 = scmp.ne.s32.totalorder %s65, %s67
    %p74 = scmp.eq.s32.totalorder %s15, 1
    %p75 = por %p73, %p74
    %p76 = scmp.ne.s32.totalorder %s67, %s68
    %p77 = scmp.eq.s32.totalorder %s15, 0
    %p78 = por %p76, %p77
    %p79 = scmp.ne.s32.totalorder %s67, %s68
    %p80 = scmp.eq.s32.totalorder %s16, 1
    %p81 = por %p79, %p80
    %p83 = scmp.ne.s32.totalorder %s68, %s82
    %p84 = scmp.eq.s32.totalorder %s16, 0
    %p85 = por %p83, %p84
    %s87 = sadd.s32 %s86, 1
    %p90 = scmp.eq.s32.totalorder %s10, 1
    %p91 = scmp.ne.s32.totalorder %s86, %s88
    %p92 = scmp.eq.s32.totalorder %s10, 0
    %p93 = por %p91, %p92
    %p94 = scmp.ne.s32.totalorder %s86, %s88
    %p95 = scmp.eq.s32.totalorder %s15, 1
    %p96 = por %p94, %p95
    %p97 = scmp.ne.s32.totalorder %s88, %s89
    %p98 = scmp.eq.s32.totalorder %s15, 0
    %p99 = por %p97, %p98
    %p100 = scmp.ne.s32.totalorder %s88, %s89
    %p101 = scmp.eq.s32.totalorder %s16, 1
    %p102 = por %p100, %p101
    %p104 = scmp.ne.s32.totalorder %s89, %s103
    %p105 = scmp.eq.s32.totalorder %s16, 0
    %p106 = por %p104, %p105
    %s107 = ssub.s32 %s10, %s17
    %p108 = scmp.eq.s32.totalorder %s107, 0
    %s110 = sadd.s32 %s109, 1
    %s111 = scalar_select %p108, %s109, %s110
    %p114 = pneg %p108
    %p115 = scmp.eq.s32.totalorder %s10, 1
    %p116 = por %p114, %p115
    %p117 = scmp.ne.s32.totalorder %s109, %s112
    %p118 = scmp.eq.s32.totalorder %s10, 0
    %p119 = por %p117, %p118
    %p120 = scmp.ne.s32.totalorder %s109, %s112
    %p121 = scmp.eq.s32.totalorder %s15, 1
    %p122 = por %p120, %p121
    %p123 = scmp.ne.s32.totalorder %s112, %s113
    %p124 = scmp.eq.s32.totalorder %s15, 0
    %p125 = por %p123, %p124
    %p126 = scmp.ne.s32.totalorder %s112, %s113
    %p127 = scmp.eq.s32.totalorder %s16, 1
    %p128 = por %p126, %p127
    %p130 = scmp.ne.s32.totalorder %s113, %s129
    %p131 = scmp.eq.s32.totalorder %s16, 0
    %p132 = por %p130, %p131
    %p133 = scmp.le.s32.totalorder 1, %s10
    %p134 = scmp.lt.s32.totalorder %s10, 3
    %p135 = pnand %p133, %p134
    %p136 = pneg %p135
    // Predicated region
    $region9: #{tpu_custom_call.1} parent=5 // pred_check
      _
    $region10: #{tpu_custom_call.1} parent=5 // pred_check_branch
      %138 = sbr.rel (%p135) target = $region12
    $region11: #{tpu_custom_call.1} parent=5 // pred_region
      %s139 = ssub.s32 %s10, 1
      // Predicated region
      $region13: #{tpu_custom_call.1} parent=11 // pred_check
        %p140 = pneg %p57
      $region14: #{tpu_custom_call.1} parent=11 // pred_check_branch
        %142 = sbr.rel (%p140) target = $region16
      $region15: #{tpu_custom_call.1} parent=11 // pred_region
        _
      $region16: #{tpu_custom_call.1} parent=11 // pred_fallthru
        _
      // Predicated region
      $region17: #{tpu_custom_call.1} parent=11 // pred_check
        %p143 = pneg %p78
      $region18: #{tpu_custom_call.1} parent=11 // pred_check_branch
        %145 = sbr.rel (%p143) target = $region20
      $region19: #{tpu_custom_call.1} parent=11 // pred_region
        _
      $region20: #{tpu_custom_call.1} parent=11 // pred_fallthru
        _
      // Predicated region
      $region21: #{tpu_custom_call.1} parent=11 // pred_check
        %p146 = pneg %p99
      $region22: #{tpu_custom_call.1} parent=11 // pred_check_branch
        %148 = sbr.rel (%p146) target = $region24
      $region23: #{tpu_custom_call.1} parent=11 // pred_region
        _
      $region24: #{tpu_custom_call.1} parent=11 // pred_fallthru
        _
    $region12: #{tpu_custom_call.1} parent=5 // pred_fallthru
      _
    %p149 = scmp.lt.s32.totalorder %s10, 2
    // Predicated region
    $region25: #{tpu_custom_call.1} parent=5 // pred_check
      %p150 = pneg %p149
    $region26: #{tpu_custom_call.1} parent=5 // pred_check_branch
      %152 = sbr.rel (%p150) target = $region28
    $region27: #{tpu_custom_call.1} parent=5 // pred_region
      // Predicated region
      $region29: #{tpu_custom_call.1} parent=27 // pred_check
        %p153 = pneg %p30
      $region30: #{tpu_custom_call.1} parent=27 // pred_check_branch
        %155 = sbr.rel (%p153) target = $region32
      $region31: #{tpu_custom_call.1} parent=27 // pred_region
        %s156 = smul.u32 32, %s10
        %p157 = scmp.lt.s32.totalorder %s156, 63
        %s158 = scalar_select %p157, %s156, 63
        %s159 = smul.addr %s158, 4
        %s160 = scalar_lea.vmem %s0, %s159
        %s161 = smul.u32 32, %s10
      $region32: #{tpu_custom_call.1} parent=27 // pred_fallthru
        _
    $region28: #{tpu_custom_call.1} parent=5 // pred_fallthru
      _
    %p162 = scmp.le.s32.totalorder 1, %s10
    %p163 = scmp.lt.s32.totalorder %s10, 3
    %p164 = pnand %p162, %p163
    %p165 = pneg %p164
    // Predicated region
    $region33: #{tpu_custom_call.1} parent=5 // pred_check
      _
    $region34: #{tpu_custom_call.1} parent=5 // pred_check_branch
      %167 = sbr.rel (%p164) target = $region36
    $region35: #{tpu_custom_call.1} parent=5 // pred_region
      %s168 = ssub.s32 %s10, 1
      %s169 = smul.u32 32, %s15
      %p170 = scmp.lt.s32.totalorder %s169, 63
      %s171 = scalar_select %p170, %s169, 63
      %s172 = smul.addr %s171, 4
      %s173 = scalar_lea.vmem %s0, %s172
      %p174 = pneg %p36
      %p175 = pneg %p33
      %p176 = pneg %p57
      %p177 = pneg %p54
      %p178 = pneg %p78
      %p179 = pneg %p75
      %p180 = pneg %p99
      %p181 = pneg %p96
      %p182 = pneg %p125
      %p183 = pneg %p122
      %s184 = smul.u32 32, %s15
      %p185 = scmp.lt.s32.totalorder %s184, 63
      %s186 = scalar_select %p185, %s184, 63
      %s187 = smul.addr %s186, 4
      %s188 = scalar_lea.vmem %s4, %s187
      %s189 = smul.u32 32, %s15
      %p190 = scmp.lt.s32.totalorder %s189, 63
      %s191 = scalar_select %p190, %s189, 63
      %s192 = smul.addr %s191, 4
      %s193 = scalar_lea.vmem %s0, %s192
      %s194 = smul.u32 32, %s15
      %s195 = smul.u32 32, %s15
      %p196 = scmp.lt.s32.totalorder %s195, 63
      %s197 = scalar_select %p196, %s195, 63
      %s198 = smul.addr %s197, 4
      %s199 = scalar_lea.vmem %s4, %s198
      %s200 = smul.u32 32, %s15
      %v202 = vld [vmem:[%s193] sm:$0xf]
      %v203 = vld [vmem:[%s193 + $0x4] sm:$0xf]
      %v204 = vld [vmem:[%s193 + $0x8] sm:$0xf]
      %v205 = vld [vmem:[%s193 + $0xc] sm:$0xf]
      %v206 = vld [vmem:[%s193 + $0x10] sm:$0xf]
      %v207 = vld [vmem:[%s193 + $0x14] sm:$0xf]
      %v208 = vld [vmem:[%s193 + $0x18] sm:$0xf]
      %v209 = vld [vmem:[%s193 + $0x1c] sm:$0xf]
      %v210 = vld [vmem:[%s193 + $0x20] sm:$0xf]
      %v211 = vld [vmem:[%s193 + $0x24] sm:$0xf]
      %v212 = vld [vmem:[%s193 + $0x28] sm:$0xf]
      %v213 = vld [vmem:[%s193 + $0x2c] sm:$0xf]
      %v214 = vld [vmem:[%s193 + $0x30] sm:$0xf]
      %v215 = vld [vmem:[%s193 + $0x34] sm:$0xf]
      %v216 = vld [vmem:[%s193 + $0x38] sm:$0xf]
      %v217 = vld [vmem:[%s193 + $0x3c] sm:$0xf]
      %v218 = vld [vmem:[%s193 + $0x40] sm:$0xf]
      %v219 = vld [vmem:[%s193 + $0x44] sm:$0xf]
      %v220 = vld [vmem:[%s193 + $0x48] sm:$0xf]
      %v221 = vld [vmem:[%s193 + $0x4c] sm:$0xf]
      %v222 = vld [vmem:[%s193 + $0x50] sm:$0xf]
      %v223 = vld [vmem:[%s193 + $0x54] sm:$0xf]
      %v224 = vld [vmem:[%s193 + $0x58] sm:$0xf]
      %v225 = vld [vmem:[%s193 + $0x5c] sm:$0xf]
      %v226 = vld [vmem:[%s193 + $0x60] sm:$0xf]
      %v227 = vld [vmem:[%s193 + $0x64] sm:$0xf]
      %v228 = vld [vmem:[%s193 + $0x68] sm:$0xf]
      %v229 = vld [vmem:[%s193 + $0x6c] sm:$0xf]
      %v230 = vld [vmem:[%s193 + $0x70] sm:$0xf]
      %v231 = vld [vmem:[%s193 + $0x74] sm:$0xf]
      %v232 = vld [vmem:[%s193 + $0x78] sm:$0xf]
      %v233 = vld [vmem:[%s193 + $0x7c] sm:$0xf]
      %v234 = vld [vmem:[%s1] sm:$0xf]
      %v267 = vunpack.c.l.b16 %v202
      %v268 = vunpack.c.l.b16 %v203
      %v269 = vunpack.c.l.b16 %v204
      %v270 = vunpack.c.l.b16 %v205
      %v271 = vunpack.c.l.b16 %v206
      %v272 = vunpack.c.l.b16 %v207
      %v273 = vunpack.c.l.b16 %v208
      %v274 = vunpack.c.l.b16 %v209
      %v275 = vunpack.c.l.b16 %v210
      %v276 = vunpack.c.l.b16 %v211
      %v277 = vunpack.c.l.b16 %v212
      %v278 = vunpack.c.l.b16 %v213
      %v279 = vunpack.c.l.b16 %v214
      %v280 = vunpack.c.l.b16 %v215
      %v281 = vunpack.c.l.b16 %v216
      %v282 = vunpack.c.l.b16 %v217
      %v283 = vunpack.c.l.b16 %v218
      %v284 = vunpack.c.l.b16 %v219
      %v285 = vunpack.c.l.b16 %v220
      %v286 = vunpack.c.l.b16 %v221
      %v287 = vunpack.c.l.b16 %v222
      %v288 = vunpack.c.l.b16 %v223
      %v289 = vunpack.c.l.b16 %v224
      %v290 = vunpack.c.l.b16 %v225
      %v291 = vunpack.c.l.b16 %v226
      %v292 = vunpack.c.l.b16 %v227
      %v293 = vunpack.c.l.b16 %v228
      %v294 = vunpack.c.l.b16 %v229
      %v295 = vunpack.c.l.b16 %v230
      %v296 = vunpack.c.l.b16 %v231
      %v297 = vunpack.c.l.b16 %v232
      %v298 = vunpack.c.l.b16 %v233
      %v299 = vpack.c.b16 %v268, %v267
      %v300 = vpack.c.b16 %v270, %v269
      %v301 = vpack.c.b16 %v272, %v271
      %v302 = vpack.c.b16 %v274, %v273
      %v303 = vpack.c.b16 %v276, %v275
      %v304 = vpack.c.b16 %v278, %v277
      %v305 = vpack.c.b16 %v280, %v279
      %v306 = vpack.c.b16 %v282, %v281
      %v307 = vpack.c.b16 %v284, %v283
      %v308 = vpack.c.b16 %v286, %v285
      %v309 = vpack.c.b16 %v288, %v287
      %v310 = vpack.c.b16 %v290, %v289
      %v311 = vpack.c.b16 %v292, %v291
      %v312 = vpack.c.b16 %v294, %v293
      %v313 = vpack.c.b16 %v296, %v295
      %v314 = vpack.c.b16 %v298, %v297
      %vm315 = vcmask 64512
      %v317 = vsel %vm315, %v299, 0
      %v320 = vsel %vm315, %v300, 0
      %v323 = vsel %vm315, %v301, 0
      %v326 = vsel %vm315, %v302, 0
      %v329 = vsel %vm315, %v303, 0
      %v332 = vsel %vm315, %v304, 0
      %v335 = vsel %vm315, %v305, 0
      %v338 = vsel %vm315, %v306, 0
      %v341 = vsel %vm315, %v307, 0
      %v344 = vsel %vm315, %v308, 0
      %v347 = vsel %vm315, %v309, 0
      %v350 = vsel %vm315, %v310, 0
      %v353 = vsel %vm315, %v311, 0
      %v356 = vsel %vm315, %v312, 0
      %v359 = vsel %vm315, %v313, 0
      %v362 = vsel %vm315, %v314, 0
      %vm364 = vcmask 1043456
      %v366 = vsel %vm364, %v234, 0
      %368 = vmatpush.bf16.msra.mxu0 0
      %369 = vmatpush.bf16.msra.mxu0 0
      %370 = vmatpush.bf16.msra.mxu0 0
      %371 = vmatpush.bf16.msra.mxu0 0
      %372 = vmatpush.bf16.msra.mxu0 0
      %373 = vmatpush.bf16.msra.mxu0 0
      %374 = vmatpush.bf16.msra.mxu0 0
      %375 = vmatpush.bf16.msra.mxu0 %v366
      %376 = vmatmul.bf16.gmra.mxu0 %v317
      %v377 = vpop.f32.mrf.mxu0
      %v378 = vadd.f32 0.0, %v377
      %v379 = vpop.f32.mrf.mxu0
      %v380 = vadd.f32 0.0, %v379
      %381 = vmatmul.bf16.gmra.mxu0 %v320
      %v382 = vpop.f32.mrf.mxu0
      %v383 = vadd.f32 0.0, %v382
      %v384 = vpop.f32.mrf.mxu0
      %v385 = vadd.f32 0.0, %v384
      %386 = vmatmul.bf16.gmra.mxu0 %v323
      %v387 = vpop.f32.mrf.mxu0
      %v388 = vadd.f32 0.0, %v387
      %v389 = vpop.f32.mrf.mxu0
      %v390 = vadd.f32 0.0, %v389
      %391 = vmatmul.bf16.gmra.mxu0 %v326
      %v392 = vpop.f32.mrf.mxu0
      %v393 = vadd.f32 0.0, %v392
      %v394 = vpop.f32.mrf.mxu0
      %v395 = vadd.f32 0.0, %v394
      %396 = vmatmul.bf16.gmra.mxu0 %v329
      %v397 = vpop.f32.mrf.mxu0
      %v398 = vadd.f32 0.0, %v397
      %v399 = vpop.f32.mrf.mxu0
      %v400 = vadd.f32 0.0, %v399
      %401 = vmatmul.bf16.gmra.mxu0 %v332
      %v402 = vpop.f32.mrf.mxu0
      %v403 = vadd.f32 0.0, %v402
      %v404 = vpop.f32.mrf.mxu0
      %v405 = vadd.f32 0.0, %v404
      %406 = vmatmul.bf16.gmra.mxu0 %v335
      %v407 = vpop.f32.mrf.mxu0
      %v408 = vadd.f32 0.0, %v407
      %v409 = vpop.f32.mrf.mxu0
      %v410 = vadd.f32 0.0, %v409
      %411 = vmatmul.bf16.gmra.mxu0 %v338
      %v412 = vpop.f32.mrf.mxu0
      %v413 = vadd.f32 0.0, %v412
      %v414 = vpop.f32.mrf.mxu0
      %v415 = vadd.f32 0.0, %v414
      %416 = vmatmul.bf16.gmra.mxu0 %v341
      %v417 = vpop.f32.mrf.mxu0
      %v418 = vadd.f32 0.0, %v417
      %v419 = vpop.f32.mrf.mxu0
      %v420 = vadd.f32 0.0, %v419
      %421 = vmatmul.bf16.gmra.mxu0 %v344
      %v422 = vpop.f32.mrf.mxu0
      %v423 = vadd.f32 0.0, %v422
      %v424 = vpop.f32.mrf.mxu0
      %v425 = vadd.f32 0.0, %v424
      %426 = vmatmul.bf16.gmra.mxu0 %v347
      %v427 = vpop.f32.mrf.mxu0
      %v428 = vadd.f32 0.0, %v427
      %v429 = vpop.f32.mrf.mxu0
      %v430 = vadd.f32 0.0, %v429
      %431 = vmatmul.bf16.gmra.mxu0 %v350
      %v432 = vpop.f32.mrf.mxu0
      %v433 = vadd.f32 0.0, %v432
      %v434 = vpop.f32.mrf.mxu0
      %v435 = vadd.f32 0.0, %v434
      %436 = vmatmul.bf16.gmra.mxu0 %v353
      %v437 = vpop.f32.mrf.mxu0
      %v438 = vadd.f32 0.0, %v437
      %v439 = vpop.f32.mrf.mxu0
      %v440 = vadd.f32 0.0, %v439
      %441 = vmatmul.bf16.gmra.mxu0 %v356
      %v442 = vpop.f32.mrf.mxu0
      %v443 = vadd.f32 0.0, %v442
      %v444 = vpop.f32.mrf.mxu0
      %v445 = vadd.f32 0.0, %v444
      %446 = vmatmul.bf16.gmra.mxu0 %v359
      %v447 = vpop.f32.mrf.mxu0
      %v448 = vadd.f32 0.0, %v447
      %v449 = vpop.f32.mrf.mxu0
      %v450 = vadd.f32 0.0, %v449
      %451 = vmatmul.bf16.gmra.mxu0 %v362
      %v452 = vpop.f32.mrf.mxu0
      %v453 = vadd.f32 0.0, %v452
      %v454 = vpop.f32.mrf.mxu0
      %v455 = vadd.f32 0.0, %v454
      %456 = vdwg.mxu0
      %v457 = vld [vmem:[%s2] sm:$0x1]
      %v459 = vperm.slane %v457, 0
      %v461 = vmul.f32 %v378, %v459
      %v462 = vmul.f32 %v380, %v459
      %v463 = vmul.f32 %v383, %v459
      %v464 = vmul.f32 %v385, %v459
      %v465 = vmul.f32 %v388, %v459
      %v466 = vmul.f32 %v390, %v459
      %v467 = vmul.f32 %v393, %v459
      %v468 = vmul.f32 %v395, %v459
      %v469 = vmul.f32 %v398, %v459
      %v470 = vmul.f32 %v400, %v459
      %v471 = vmul.f32 %v403, %v459
      %v472 = vmul.f32 %v405, %v459
      %v473 = vmul.f32 %v408, %v459
      %v474 = vmul.f32 %v410, %v459
      %v475 = vmul.f32 %v413, %v459
      %v476 = vmul.f32 %v415, %v459
      %v477 = vmul.f32 %v418, %v459
      %v478 = vmul.f32 %v420, %v459
      %v479 = vmul.f32 %v423, %v459
      %v480 = vmul.f32 %v425, %v459
      %v481 = vmul.f32 %v428, %v459
      %v482 = vmul.f32 %v430, %v459
      %v483 = vmul.f32 %v433, %v459
      %v484 = vmul.f32 %v435, %v459
      %v485 = vmul.f32 %v438, %v459
      %v486 = vmul.f32 %v440, %v459
      %v487 = vmul.f32 %v443, %v459
      %v488 = vmul.f32 %v445, %v459
      %v489 = vmul.f32 %v448, %v459
      %v490 = vmul.f32 %v450, %v459
      %v491 = vmul.f32 %v453, %v459
      %v492 = vmul.f32 %v455, %v459
      %v493 = vld [vmem:[%s3] sm:$0x1]
      %v495 = vperm.slane %v493, 0
      %v497 = vadd.f32 %v461, %v495
      %v498 = vadd.f32 %v462, %v495
      %v499 = vadd.f32 %v463, %v495
      %v500 = vadd.f32 %v464, %v495
      %v501 = vadd.f32 %v465, %v495
      %v502 = vadd.f32 %v466, %v495
      %v503 = vadd.f32 %v467, %v495
      %v504 = vadd.f32 %v468, %v495
      %v505 = vadd.f32 %v469, %v495
      %v506 = vadd.f32 %v470, %v495
      %v507 = vadd.f32 %v471, %v495
      %v508 = vadd.f32 %v472, %v495
      %v509 = vadd.f32 %v473, %v495
      %v510 = vadd.f32 %v474, %v495
      %v511 = vadd.f32 %v475, %v495
      %v512 = vadd.f32 %v476, %v495
      %v513 = vadd.f32 %v477, %v495
      %v514 = vadd.f32 %v478, %v495
      %v515 = vadd.f32 %v479, %v495
      %v516 = vadd.f32 %v480, %v495
      %v517 = vadd.f32 %v481, %v495
      %v518 = vadd.f32 %v482, %v495
      %v519 = vadd.f32 %v483, %v495
      %v520 = vadd.f32 %v484, %v495
      %v521 = vadd.f32 %v485, %v495
      %v522 = vadd.f32 %v486, %v495
      %v523 = vadd.f32 %v487, %v495
      %v524 = vadd.f32 %v488, %v495
      %v525 = vadd.f32 %v489, %v495
      %v526 = vadd.f32 %v490, %v495
      %v527 = vadd.f32 %v491, %v495
      %v528 = vadd.f32 %v492, %v495
      %v529 = vmax.f32 %v497, 0.0
      %v530 = vmax.f32 %v498, 0.0
      %v531 = vmax.f32 %v499, 0.0
      %v532 = vmax.f32 %v500, 0.0
      %v533 = vmax.f32 %v501, 0.0
      %v534 = vmax.f32 %v502, 0.0
      %v535 = vmax.f32 %v503, 0.0
      %v536 = vmax.f32 %v504, 0.0
      %v537 = vmax.f32 %v505, 0.0
      %v538 = vmax.f32 %v506, 0.0
      %v539 = vmax.f32 %v507, 0.0
      %v540 = vmax.f32 %v508, 0.0
      %v541 = vmax.f32 %v509, 0.0
      %v542 = vmax.f32 %v510, 0.0
      %v543 = vmax.f32 %v511, 0.0
      %v544 = vmax.f32 %v512, 0.0
      %v545 = vmax.f32 %v513, 0.0
      %v546 = vmax.f32 %v514, 0.0
      %v547 = vmax.f32 %v515, 0.0
      %v548 = vmax.f32 %v516, 0.0
      %v549 = vmax.f32 %v517, 0.0
      %v550 = vmax.f32 %v518, 0.0
      %v551 = vmax.f32 %v519, 0.0
      %v552 = vmax.f32 %v520, 0.0
      %v553 = vmax.f32 %v521, 0.0
      %v554 = vmax.f32 %v522, 0.0
      %v555 = vmax.f32 %v523, 0.0
      %v556 = vmax.f32 %v524, 0.0
      %v557 = vmax.f32 %v525, 0.0
      %v558 = vmax.f32 %v526, 0.0
      %v559 = vmax.f32 %v527, 0.0
      %v560 = vmax.f32 %v528, 0.0
      %v561 = vpack.c.bf16 %v529, %v529
      %v562 = vpack.c.bf16 %v530, %v530
      %v563 = vpack.c.bf16 %v531, %v531
      %v564 = vpack.c.bf16 %v532, %v532
      %v565 = vpack.c.bf16 %v533, %v533
      %v566 = vpack.c.bf16 %v534, %v534
      %v567 = vpack.c.bf16 %v535, %v535
      %v568 = vpack.c.bf16 %v536, %v536
      %v569 = vpack.c.bf16 %v537, %v537
      %v570 = vpack.c.bf16 %v538, %v538
      %v571 = vpack.c.bf16 %v539, %v539
      %v572 = vpack.c.bf16 %v540, %v540
      %v573 = vpack.c.bf16 %v541, %v541
      %v574 = vpack.c.bf16 %v542, %v542
      %v575 = vpack.c.bf16 %v543, %v543
      %v576 = vpack.c.bf16 %v544, %v544
      %v577 = vpack.c.bf16 %v545, %v545
      %v578 = vpack.c.bf16 %v546, %v546
      %v579 = vpack.c.bf16 %v547, %v547
      %v580 = vpack.c.bf16 %v548, %v548
      %v581 = vpack.c.bf16 %v549, %v549
      %v582 = vpack.c.bf16 %v550, %v550
      %v583 = vpack.c.bf16 %v551, %v551
      %v584 = vpack.c.bf16 %v552, %v552
      %v585 = vpack.c.bf16 %v553, %v553
      %v586 = vpack.c.bf16 %v554, %v554
      %v587 = vpack.c.bf16 %v555, %v555
      %v588 = vpack.c.bf16 %v556, %v556
      %v589 = vpack.c.bf16 %v557, %v557
      %v590 = vpack.c.bf16 %v558, %v558
      %v591 = vpack.c.bf16 %v559, %v559
      %v592 = vpack.c.bf16 %v560, %v560
      %vm593 = vcmask 27648
      %594 = vst.msk [vmem:[%s199] sm:$0xf] %vm593, %v561
      %595 = vst.msk [vmem:[%s199 + $0x4] sm:$0xf] %vm593, %v562
      %596 = vst.msk [vmem:[%s199 + $0x8] sm:$0xf] %vm593, %v563
      %597 = vst.msk [vmem:[%s199 + $0xc] sm:$0xf] %vm593, %v564
      %598 = vst.msk [vmem:[%s199 + $0x10] sm:$0xf] %vm593, %v565
      %599 = vst.msk [vmem:[%s199 + $0x14] sm:$0xf] %vm593, %v566
      %600 = vst.msk [vmem:[%s199 + $0x18] sm:$0xf] %vm593, %v567
      %601 = vst.msk [vmem:[%s199 + $0x1c] sm:$0xf] %vm593, %v568
      %602 = vst.msk [vmem:[%s199 + $0x20] sm:$0xf] %vm593, %v569
      %603 = vst.msk [vmem:[%s199 + $0x24] sm:$0xf] %vm593, %v570
      %604 = vst.msk [vmem:[%s199 + $0x28] sm:$0xf] %vm593, %v571
      %605 = vst.msk [vmem:[%s199 + $0x2c] sm:$0xf] %vm593, %v572
      %606 = vst.msk [vmem:[%s199 + $0x30] sm:$0xf] %vm593, %v573
      %607 = vst.msk [vmem:[%s199 + $0x34] sm:$0xf] %vm593, %v574
      %608 = vst.msk [vmem:[%s199 + $0x38] sm:$0xf] %vm593, %v575
      %609 = vst.msk [vmem:[%s199 + $0x3c] sm:$0xf] %vm593, %v576
      %610 = vst.msk [vmem:[%s199 + $0x40] sm:$0xf] %vm593, %v577
      %611 = vst.msk [vmem:[%s199 + $0x44] sm:$0xf] %vm593, %v578
      %612 = vst.msk [vmem:[%s199 + $0x48] sm:$0xf] %vm593, %v579
      %613 = vst.msk [vmem:[%s199 + $0x4c] sm:$0xf] %vm593, %v580
      %614 = vst.msk [vmem:[%s199 + $0x50] sm:$0xf] %vm593, %v581
      %615 = vst.msk [vmem:[%s199 + $0x54] sm:$0xf] %vm593, %v582
      %616 = vst.msk [vmem:[%s199 + $0x58] sm:$0xf] %vm593, %v583
      %617 = vst.msk [vmem:[%s199 + $0x5c] sm:$0xf] %vm593, %v584
      %618 = vst.msk [vmem:[%s199 + $0x60] sm:$0xf] %vm593, %v585
      %619 = vst.msk [vmem:[%s199 + $0x64] sm:$0xf] %vm593, %v586
      %620 = vst.msk [vmem:[%s199 + $0x68] sm:$0xf] %vm593, %v587
      %621 = vst.msk [vmem:[%s199 + $0x6c] sm:$0xf] %vm593, %v588
      %622 = vst.msk [vmem:[%s199 + $0x70] sm:$0xf] %vm593, %v589
      %623 = vst.msk [vmem:[%s199 + $0x74] sm:$0xf] %vm593, %v590
      %624 = vst.msk [vmem:[%s199 + $0x78] sm:$0xf] %vm593, %v591
      %625 = vst.msk [vmem:[%s199 + $0x7c] sm:$0xf] %vm593, %v592
      %s626 = smul.u32 32, %s15
      %p627 = scmp.lt.s32.totalorder %s626, 63
      %s628 = scalar_select %p627, %s626, 63
      %s629 = smul.addr %s628, 4
      %s630 = scalar_lea.vmem %s4, %s629
      // Predicated region
      $region37: #{tpu_custom_call.1} parent=35 // pred_check
        %p631 = pneg %p122
      $region38: #{tpu_custom_call.1} parent=35 // pred_check_branch
        %633 = sbr.rel (%p631) target = $region40
      $region39: #{tpu_custom_call.1} parent=35 // pred_region
        %s634 = smul.u32 32, %s15
      $region40: #{tpu_custom_call.1} parent=35 // pred_fallthru
        _
    $region36: #{tpu_custom_call.1} parent=5 // pred_fallthru
      _
    %p635 = scmp.le.s32.totalorder 2, %s10
    // Predicated region
    $region41: #{tpu_custom_call.1} parent=5 // pred_check
      %p636 = pneg %p635
    $region42: #{tpu_custom_call.1} parent=5 // pred_check_branch
      %638 = sbr.rel (%p636) target = $region44
    $region43: #{tpu_custom_call.1} parent=5 // pred_region
      %s639 = ssub.s32 %s10, 2
      // Predicated region
      $region45: #{tpu_custom_call.1} parent=43 // pred_check
        %p640 = pneg %p128
      $region46: #{tpu_custom_call.1} parent=43 // pred_check_branch
        %642 = sbr.rel (%p640) target = $region48
      $region47: #{tpu_custom_call.1} parent=43 // pred_region
        %s643 = smul.u32 32, %s16
        %p644 = scmp.lt.s32.totalorder %s643, 63
        %s645 = scalar_select %p644, %s643, 63
        %s646 = smul.addr %s645, 4
        %s647 = scalar_lea.vmem %s4, %s646
      $region48: #{tpu_custom_call.1} parent=43 // pred_fallthru
        _
    $region44: #{tpu_custom_call.1} parent=5 // pred_fallthru
      _
  $region6: #{tpu_custom_call.1} parent=0 // loop_footer
    %s14 = sadd.s32 1, %s10
  $region7: #{tpu_custom_call.1} parent=0 // loop_footer_branch
    %9 = sbr.rel target = $region3
  $region8: #{tpu_custom_call.1} parent=0 // loop_exit
    _

</llo_original>
